<compile_context>
chip_gen: v7x
topology: tpu7x:2x2x1
jax: 0.10.0
libtpu: 0.0.40
codegen_flags: <defaults>
</compile_context>

<pallas_src>
import jax
import jax.numpy as jnp
from jax.experimental import pallas as pl
from jax.experimental.pallas import tpu as pltpu


# -----------------------------------------------------------------------------
# Fused kernel: shortcut (BN-affine -> GELU -> 1x1 conv) + residual add.
# Block layout: (channel, pixel-chunk) packed on sublanes, 128 pixels on lanes.
# -----------------------------------------------------------------------------
def _mbconv_residual_kernel(x_ref, p_ref, o_ref):
    # x_ref / o_ref : (1, S, 128)  one image;  S = C * (N_pad // 128)
    # p_ref         : (S, S + 3)   packed params:
    #                   [:, :S]   chunk-expanded (block-diagonal) 1x1-conv weight
    #                   [:, S]    BN scale   [:, S+1] BN shift   [:, S+2] conv bias
    x = x_ref[0]                              # (S, 128) f32
    p = p_ref[...]
    s = x.shape[0]

    w_exp = p[:, :s]                          # (S, S)
    scale = p[:, s:s + 1]                     # (S, 1) -> lane broadcast
    shift = p[:, s + 1:s + 2]
    bias = p[:, s + 2:s + 3]

    # Shortcut path: eval-mode BatchNorm folded into a per-channel affine.
    h = x * scale + shift

    # Exact (erf-form) GELU matching PyTorch nn.GELU() default.
    # erf via Abramowitz & Stegun 7.1.26 (|err| < 2e-7): only exp / div /
    # mul-adds, a handful of ops on a single (8,128) vreg.
    z = h * 0.7071067811865476                # h / sqrt(2)
    az = jnp.abs(z)
    t = 1.0 / (1.0 + 0.3275911 * az)
    poly = t * (0.254829592 + t * (-0.284496736 + t * (1.421413741
               + t * (-1.453152027 + t * 1.061405429))))
    erf_abs = 1.0 - poly * jnp.exp(-az * az)
    erf_z = jnp.where(z < 0.0, -erf_abs, erf_abs)
    g = 0.5 * h * (1.0 + erf_z)

    # 1x1 conv == channel mix.  Single tiny MXU matmul on the chunk-expanded
    # block-diagonal weight; keeps the channel mix off the busy VPU/XLU slots.
    sc = jnp.dot(w_exp, g, preferred_element_type=jnp.float32) + bias

    # out = fn(x) + shortcut(x);  fn == identity (not provided), Dropsample == id.
    o_ref[0] = (x + sc).astype(o_ref.dtype)


# -----------------------------------------------------------------------------
# Wrapper: fold BN, pack params, lane/sublane-dense layout, single pallas_call.
# -----------------------------------------------------------------------------
@jax.jit
def mbconv_residual_forward(params, x):
    # x: (B, C, H, W) NCHW (PyTorch convention); dim_in == dim_out == C.
    B, C, H, W = x.shape
    N = H * W
    LANES = 128
    N_pad = ((N + LANES - 1) // LANES) * LANES
    CH = N_pad // LANES                       # pixel chunks folded onto sublanes
    S = C * CH                                # sublane extent of one image block

    x_flat = x.reshape(B, C, N).astype(jnp.float32)
    if N_pad != N:
        x_flat = jnp.pad(x_flat, ((0, 0), (0, 0), (0, N_pad - N)))
    # Free row-major reshape: sublane index = c*CH + chunk, lane = pixel-in-chunk.
    x_packed = x_flat.reshape(B, S, LANES)

    # Fold eval-mode BatchNorm2d into a per-channel affine (scale, shift).
    eps = 1e-5
    inv_std = jax.lax.rsqrt(params["bn_var"].astype(jnp.float32) + eps)
    scale = params["bn_gamma"].astype(jnp.float32) * inv_std
    shift = params["bn_beta"].astype(jnp.float32) - params["bn_mean"].astype(jnp.float32) * scale

    w = params["conv_w"].astype(jnp.float32)  # (Cout, Cin)
    b = params["conv_b"].astype(jnp.float32)  # (Cout,)
    assert w.shape[0] == w.shape[1] == C, "residual add requires dim_in == dim_out"

    # Expand to the packed sublane layout.  The 1x1-conv weight becomes
    # block-diagonal across pixel chunks so the channel mix stays one matmul.
    eye_ch = jnp.eye(CH, dtype=jnp.float32)
    w_exp = (w[:, None, :, None] * eye_ch[None, :, None, :]).reshape(S, S)
    scale_p = jnp.repeat(scale, CH)[:, None]
    shift_p = jnp.repeat(shift, CH)[:, None]
    bias_p = jnp.repeat(b, CH)[:, None]

    # Single small constant operand (one DMA) holding weight + scale + shift + bias.
    packed = jnp.concatenate([w_exp, scale_p, shift_p, bias_p], axis=1)  # (S, S+3)

    cost = pl.CostEstimate(
        flops=int(B * (24 * S * LANES + 2 * S * S * LANES)),
        transcendentals=int(2 * B * S * LANES),
        bytes_accessed=int(4 * (2 * B * S * LANES + S * (S + 3))),
    )

    out = pl.pallas_call(
        _mbconv_residual_kernel,
        out_shape=jax.ShapeDtypeStruct((B, S, LANES), jnp.float32),
        grid=(B,),
        in_specs=[
            pl.BlockSpec((1, S, LANES), lambda bi: (bi, 0, 0)),
            pl.BlockSpec((S, S + 3), lambda bi: (0, 0)),
        ],
        out_specs=pl.BlockSpec((1, S, LANES), lambda bi: (bi, 0, 0)),
        compiler_params=pltpu.CompilerParams(
            dimension_semantics=("parallel",),
        ),
        cost_estimate=cost,
    )(x_packed, packed)

    out = out.reshape(B, C, N_pad)[:, :, :N].reshape(B, C, H, W)
    return out


# -----------------------------------------------------------------------------
# Pure-JAX reference (same inference semantics) for a correctness gate.
# -----------------------------------------------------------------------------
def _reference(params, x):
    eps = 1e-5
    g, bt = params["bn_gamma"], params["bn_beta"]
    mu, var = params["bn_mean"], params["bn_var"]
    h = (x - mu[None, :, None, None]) * jax.lax.rsqrt(var + eps)[None, :, None, None]
    h = h * g[None, :, None, None] + bt[None, :, None, None]
    h = jax.nn.gelu(h, approximate=False)
    sc = jnp.einsum("oc,bchw->bohw", params["conv_w"], h) + params["conv_b"][None, :, None, None]
    return x + sc


# -----------------------------------------------------------------------------
# Deterministic synthetic parameters.
# -----------------------------------------------------------------------------
def init_params(key, C):
    k = jax.random.split(key, 6)
    return {
        "bn_gamma": 1.0 + 0.1 * jax.random.normal(k[0], (C,), jnp.float32),
        "bn_beta": 0.1 * jax.random.normal(k[1], (C,), jnp.float32),
        "bn_mean": 0.1 * jax.random.normal(k[2], (C,), jnp.float32),
        "bn_var": jax.random.uniform(k[3], (C,), jnp.float32, minval=0.5, maxval=1.5),
        "conv_w": 0.1 * jax.random.normal(k[4], (C, C), jnp.float32),
        "conv_b": 0.1 * jax.random.normal(k[5], (C,), jnp.float32),
    }


if __name__ == "__main__":
    key = jax.random.PRNGKey(0)
    kp, kx = jax.random.split(key)

    B, C, H, W = 2, 4, 16, 16
    params = init_params(kp, C)
    x = jax.random.normal(kx, (B, C, H, W), jnp.float32)

    out = mbconv_residual_forward(params, x)
    out = jax.block_until_ready(out)
    assert out.shape == (B, C, H, W), out.shape

    ref = _reference(params, x)
    max_err = float(jnp.max(jnp.abs(out - ref)))
    assert max_err < 5e-3, f"mismatch vs reference: max_abs_err={max_err}"

    print("KERNEL_OK")
</pallas_src>

<mosaic_0001>
module attributes {stable_mosaic.version = 11 : i64} {
  func.func @_mbconv_residual_kernel(%arg0: i32, %arg1: memref<1x8x128xf32, #tpu.memory_space<vmem>>, %arg2: memref<8x11xf32, #tpu.memory_space<vmem>>, %arg3: memref<1x8x128xf32, #tpu.memory_space<vmem>>) attributes {dimension_semantics = [#tpu.dimension_semantics<parallel>], iteration_bounds = array<i64: 2>, scalar_prefetch = 0 : i64, scratch_operands = 0 : i64, tpu.core_type = #tpu.core_type<tc>, window_params = [{transform_indices = @transform_0, window_bounds = array<i64: 1, 8, 128>}, {pipeline_mode = #tpu.pipeline_mode<synchronous>, transform_indices = @transform_1, window_bounds = array<i64: 8, 11>}, {transform_indices = @transform_2, window_bounds = array<i64: 1, 8, 128>}]} {
    %c0 = arith.constant 0 : index
    %c0_0 = arith.constant 0 : index
    %c0_1 = arith.constant 0 : index
    %0 = vector.load %arg1[%c0, %c0_0, %c0_1] : memref<1x8x128xf32, #tpu.memory_space<vmem>>, vector<1x8x128xf32>
    %1 = vector.shape_cast %0 : vector<1x8x128xf32> to vector<8x128xf32>
    %c0_2 = arith.constant 0 : index
    %c0_3 = arith.constant 0 : index
    %2 = vector.load %arg2[%c0_2, %c0_3] : memref<8x11xf32, #tpu.memory_space<vmem>>, vector<8x11xf32>
    %3 = vector.extract_strided_slice %2 {offsets = [0, 0], sizes = [8, 8], strides = [1, 1]} : vector<8x11xf32> to vector<8x8xf32>
    %4 = vector.extract_strided_slice %2 {offsets = [0, 8], sizes = [8, 1], strides = [1, 1]} : vector<8x11xf32> to vector<8x1xf32>
    %5 = vector.extract_strided_slice %2 {offsets = [0, 9], sizes = [8, 1], strides = [1, 1]} : vector<8x11xf32> to vector<8x1xf32>
    %6 = vector.extract_strided_slice %2 {offsets = [0, 10], sizes = [8, 1], strides = [1, 1]} : vector<8x11xf32> to vector<8x1xf32>
    %7 = vector.broadcast %4 : vector<8x1xf32> to vector<8x128xf32>
    %8 = arith.mulf %1, %7 : vector<8x128xf32>
    %9 = vector.broadcast %5 : vector<8x1xf32> to vector<8x128xf32>
    %10 = arith.addf %8, %9 : vector<8x128xf32>
    %cst = arith.constant 0.707106769 : f32
    %11 = vector.broadcast %cst : f32 to vector<8x128xf32>
    %12 = arith.mulf %10, %11 : vector<8x128xf32>
    %13 = math.absf %12 : vector<8x128xf32>
    %cst_4 = arith.constant 0.327591091 : f32
    %14 = vector.broadcast %cst_4 : f32 to vector<8x128xf32>
    %15 = arith.mulf %14, %13 : vector<8x128xf32>
    %cst_5 = arith.constant 1.000000e+00 : f32
    %16 = vector.broadcast %cst_5 : f32 to vector<8x128xf32>
    %17 = arith.addf %16, %15 : vector<8x128xf32>
    %cst_6 = arith.constant 1.000000e+00 : f32
    %18 = vector.broadcast %cst_6 : f32 to vector<8x128xf32>
    %19 = arith.divf %18, %17 : vector<8x128xf32>
    %cst_7 = arith.constant 1.06140542 : f32
    %20 = vector.broadcast %cst_7 : f32 to vector<8x128xf32>
    %21 = arith.mulf %19, %20 : vector<8x128xf32>
    %cst_8 = arith.constant -1.45315206 : f32
    %22 = vector.broadcast %cst_8 : f32 to vector<8x128xf32>
    %23 = arith.addf %22, %21 : vector<8x128xf32>
    %24 = arith.mulf %19, %23 : vector<8x128xf32>
    %cst_9 = arith.constant 1.42141378 : f32
    %25 = vector.broadcast %cst_9 : f32 to vector<8x128xf32>
    %26 = arith.addf %25, %24 : vector<8x128xf32>
    %27 = arith.mulf %19, %26 : vector<8x128xf32>
    %cst_10 = arith.constant -0.284496725 : f32
    %28 = vector.broadcast %cst_10 : f32 to vector<8x128xf32>
    %29 = arith.addf %28, %27 : vector<8x128xf32>
    %30 = arith.mulf %19, %29 : vector<8x128xf32>
    %cst_11 = arith.constant 0.254829586 : f32
    %31 = vector.broadcast %cst_11 : f32 to vector<8x128xf32>
    %32 = arith.addf %31, %30 : vector<8x128xf32>
    %33 = arith.mulf %19, %32 : vector<8x128xf32>
    %cst_12 = arith.constant 0.000000e+00 : f32
    %34 = vector.broadcast %cst_12 : f32 to vector<8x128xf32>
    %35 = arith.subf %34, %13 : vector<8x128xf32>
    %36 = arith.mulf %35, %13 : vector<8x128xf32>
    %37 = math.exp %36 : vector<8x128xf32>
    %38 = arith.mulf %33, %37 : vector<8x128xf32>
    %cst_13 = arith.constant 1.000000e+00 : f32
    %39 = vector.broadcast %cst_13 : f32 to vector<8x128xf32>
    %40 = arith.subf %39, %38 : vector<8x128xf32>
    %cst_14 = arith.constant 0.000000e+00 : f32
    %41 = vector.broadcast %cst_14 : f32 to vector<8x128xf32>
    %42 = arith.cmpf olt, %12, %41 : vector<8x128xf32>
    %cst_15 = arith.constant 0.000000e+00 : f32
    %43 = vector.broadcast %cst_15 : f32 to vector<8x128xf32>
    %44 = arith.subf %43, %40 : vector<8x128xf32>
    %45 = arith.select %42, %44, %40 : vector<8x128xi1>, vector<8x128xf32>
    %cst_16 = arith.constant 5.000000e-01 : f32
    %46 = vector.broadcast %cst_16 : f32 to vector<8x128xf32>
    %47 = arith.mulf %46, %10 : vector<8x128xf32>
    %cst_17 = arith.constant 1.000000e+00 : f32
    %48 = vector.broadcast %cst_17 : f32 to vector<8x128xf32>
    %49 = arith.addf %48, %45 : vector<8x128xf32>
    %50 = arith.mulf %47, %49 : vector<8x128xf32>
    %cst_18 = arith.constant dense<0.000000e+00> : vector<8x128xf32>
    %51 = tpu.matmul %3, %50, %cst_18 {dimension_numbers = #tpu.dot_dimension_numbers<[1], [0], [0], [1], [0, 0, 1, 1], [], []>} : vector<8x8xf32>, vector<8x128xf32>, vector<8x128xf32> -> vector<8x128xf32>
    %52 = vector.broadcast %6 : vector<8x1xf32> to vector<8x128xf32>
    %53 = arith.addf %51, %52 : vector<8x128xf32>
    %54 = arith.addf %1, %53 : vector<8x128xf32>
    %c0_19 = arith.constant 0 : index
    %c0_20 = arith.constant 0 : index
    %c0_21 = arith.constant 0 : index
    %55 = vector.load %arg3[%c0_19, %c0_20, %c0_21] : memref<1x8x128xf32, #tpu.memory_space<vmem>>, vector<1x8x128xf32>
    %56 = vector.shape_cast %55 : vector<1x8x128xf32> to vector<8x128xf32>
    %57 = vector.shape_cast %54 : vector<8x128xf32> to vector<1x8x128xf32>
    tpu.vector_store %arg3[%c0_19, %c0_20, %c0_21], %57 {strides = array<i32>} : memref<1x8x128xf32, #tpu.memory_space<vmem>>, vector<1x8x128xf32>,
    return
  }
  func.func @transform_0(%arg0: i32) -> (i32, i32, i32) {
    %c0_i32 = arith.constant 0 : i32
    %c0_i32_0 = arith.constant 0 : i32
    %c0_i32_1 = arith.constant 0 : i32
    return %arg0, %c0_i32, %c0_i32_0 : i32, i32, i32
  }
  func.func @transform_1(%arg0: i32) -> (i32, i32) {
    %c0_i32 = arith.constant 0 : i32
    %c0_i32_0 = arith.constant 0 : i32
    %c0_i32_1 = arith.constant 0 : i32
    return %c0_i32, %c0_i32_0 : i32, i32
  }
  func.func @transform_2(%arg0: i32) -> (i32, i32, i32) {
    %c0_i32 = arith.constant 0 : i32
    %c0_i32_0 = arith.constant 0 : i32
    %c0_i32_1 = arith.constant 0 : i32
    return %arg0, %c0_i32, %c0_i32_0 : i32, i32, i32
  }
}

</mosaic_0001>

<llo_original>
// kernel: mbconv_residual_forward.1
$region0: #{mbconv_residual_forward.1}
  #allocation0 [shape = 'u32[]', space=smem, size = 0x4, offset = 0x4, fixed_abs, tag = 'smem constant byte address 0x4 - core index']
  #allocation1 [shape = 'u32[144,128]{1,0:T(1,128)}', space=vmem, size = 0x12000, scoped, tag = 'internal scratch']
  %s0 = inlined_call_operand.vmem [shape: f32[2,8,128], index: 0, kind: input, shape index: {}]
  %s1 = inlined_call_operand.vmem [shape: f32[8,11], index: 1, kind: input, shape index: {}]
  %s2 = inlined_call_operand.vmem [shape: f32[2,8,128], index: 2, kind: output, shape index: {}]
  %s3 = sld [smem:[#allocation0]]
  $region41: #{mbconv_residual_forward.1} parent=0
    _
  %s5 = ssub.s32 1, %s3
  %s6 = scalar_select 0, %s5, %s3
  loop: start=0, step=1, limit=4
  $region2: #{mbconv_residual_forward.1} parent=0 // loop_pre_header
    _
  $region3: #{mbconv_residual_forward.1} parent=0 // loop_header
    %s8 = sphi 0, %s12
    %p9 = scmp.ge.s32.totalorder %s8, 4
    %s18 = sphi 0, %s20
    %s21 = sphi 0, %s18
    %s22 = sphi 0, %s21
    %s38 = sphi 0, %s22
    %s42 = sphi 0, %s42
    %s44 = sphi 0, %s42
    %s45 = sphi 0, %s44
    %s59 = sphi 0, %s45
    %s65 = sphi 0, %s67
    %s68 = sphi 0, %s65
    %s69 = sphi 0, %s68
    %s85 = sphi 0, %s69
  $region4: #{mbconv_residual_forward.1} parent=0 // loop_header_branch
    %11 = sbr.rel (%p9) target = $region8
  $region5: #{mbconv_residual_forward.1} parent=0 // loop_body
    %s13 = ssub.s32 %s8, 1
    %s14 = ssub.s32 %s8, 2
    %s15 = sadd.s32 %s8, 1
    %s16 = ssub.s32 %s8, %s15
    %p17 = scmp.eq.s32.totalorder %s16, 0
    %s19 = sadd.s32 %s18, 1
    %s20 = scalar_select %p17, %s18, %s19
    %p23 = pneg %p17
    %p24 = scmp.eq.s32.totalorder %s8, 1
    %p25 = por %p23, %p24
    %p26 = scmp.ne.s32.totalorder %s18, %s21
    %p27 = scmp.eq.s32.totalorder %s8, 0
    %p28 = por %p26, %p27
    %p29 = scmp.ne.s32.totalorder %s18, %s21
    %p30 = scmp.eq.s32.totalorder %s13, 1
    %p31 = por %p29, %p30
    %p32 = scmp.ne.s32.totalorder %s21, %s22
    %p33 = scmp.eq.s32.totalorder %s13, 0
    %p34 = por %p32, %p33
    %p35 = scmp.ne.s32.totalorder %s21, %s22
    %p36 = scmp.eq.s32.totalorder %s14, 1
    %p37 = por %p35, %p36
    %p39 = scmp.ne.s32.totalorder %s22, %s38
    %p40 = scmp.eq.s32.totalorder %s14, 0
    %p41 = por %p39, %p40
    %s43 = sadd.s32 %s42, 1
    %p46 = scmp.eq.s32.totalorder %s8, 1
    %p47 = scmp.ne.s32.totalorder %s42, %s44
    %p48 = scmp.eq.s32.totalorder %s8, 0
    %p49 = por %p47, %p48
    %p50 = scmp.ne.s32.totalorder %s42, %s44
    %p51 = scmp.eq.s32.totalorder %s13, 1
    %p52 = por %p50, %p51
    %p53 = scmp.ne.s32.totalorder %s44, %s45
    %p54 = scmp.eq.s32.totalorder %s13, 0
    %p55 = por %p53, %p54
    %p56 = scmp.ne.s32.totalorder %s44, %s45
    %p57 = scmp.eq.s32.totalorder %s14, 1
    %p58 = por %p56, %p57
    %p60 = scmp.ne.s32.totalorder %s45, %s59
    %p61 = scmp.eq.s32.totalorder %s14, 0
    %p62 = por %p60, %p61
    %s63 = ssub.s32 %s8, %s15
    %p64 = scmp.eq.s32.totalorder %s63, 0
    %s66 = sadd.s32 %s65, 1
    %s67 = scalar_select %p64, %s65, %s66
    %p70 = pneg %p64
    %p71 = scmp.eq.s32.totalorder %s8, 1
    %p72 = por %p70, %p71
    %p73 = scmp.ne.s32.totalorder %s65, %s68
    %p74 = scmp.eq.s32.totalorder %s8, 0
    %p75 = por %p73, %p74
    %p76 = scmp.ne.s32.totalorder %s65, %s68
    %p77 = scmp.eq.s32.totalorder %s13, 1
    %p78 = por %p76, %p77
    %p79 = scmp.ne.s32.totalorder %s68, %s69
    %p80 = scmp.eq.s32.totalorder %s13, 0
    %p81 = por %p79, %p80
    %p82 = scmp.ne.s32.totalorder %s68, %s69
    %p83 = scmp.eq.s32.totalorder %s14, 1
    %p84 = por %p82, %p83
    %p86 = scmp.ne.s32.totalorder %s69, %s85
    %p87 = scmp.eq.s32.totalorder %s14, 0
    %p88 = por %p86, %p87
    %p89 = scmp.le.s32.totalorder 1, %s8
    %p90 = scmp.lt.s32.totalorder %s8, 3
    %p91 = pnand %p89, %p90
    %p92 = pneg %p91
    // Predicated region
    $region9: #{mbconv_residual_forward.1} parent=5 // pred_check
      _
    $region10: #{mbconv_residual_forward.1} parent=5 // pred_check_branch
      %94 = sbr.rel (%p91) target = $region12
    $region11: #{mbconv_residual_forward.1} parent=5 // pred_region
      %s95 = ssub.s32 %s8, 1
      // Predicated region
      $region13: #{mbconv_residual_forward.1} parent=11 // pred_check
        %p96 = pneg %p55
      $region14: #{mbconv_residual_forward.1} parent=11 // pred_check_branch
        %98 = sbr.rel (%p96) target = $region16
      $region15: #{mbconv_residual_forward.1} parent=11 // pred_region
        _
      $region16: #{mbconv_residual_forward.1} parent=11 // pred_fallthru
        _
    $region12: #{mbconv_residual_forward.1} parent=5 // pred_fallthru
      _
    %p99 = scmp.lt.s32.totalorder %s8, 2
    // Predicated region
    $region17: #{mbconv_residual_forward.1} parent=5 // pred_check
      %p100 = pneg %p99
    $region18: #{mbconv_residual_forward.1} parent=5 // pred_check_branch
      %102 = sbr.rel (%p100) target = $region20
    $region19: #{mbconv_residual_forward.1} parent=5 // pred_region
      // Predicated region
      $region21: #{mbconv_residual_forward.1} parent=19 // pred_check
        %p103 = pneg %p28
      $region22: #{mbconv_residual_forward.1} parent=19 // pred_check_branch
        %105 = sbr.rel (%p103) target = $region24
      $region23: #{mbconv_residual_forward.1} parent=19 // pred_region
        %p106 = scmp.lt.s32.totalorder %s8, 1
        %s107 = scalar_select %p106, %s8, 1
        %s108 = smul.addr %s107, 8
        %s109 = scalar_lea.vmem %s0, %s108
      $region24: #{mbconv_residual_forward.1} parent=19 // pred_fallthru
        _
    $region20: #{mbconv_residual_forward.1} parent=5 // pred_fallthru
      _
    %p110 = scmp.le.s32.totalorder 1, %s8
    %p111 = scmp.lt.s32.totalorder %s8, 3
    %p112 = pnand %p110, %p111
    %p113 = pneg %p112
    // Predicated region
    $region25: #{mbconv_residual_forward.1} parent=5 // pred_check
      _
    $region26: #{mbconv_residual_forward.1} parent=5 // pred_check_branch
      %115 = sbr.rel (%p112) target = $region28
    $region27: #{mbconv_residual_forward.1} parent=5 // pred_region
      %s116 = ssub.s32 %s8, 1
      %p117 = scmp.lt.s32.totalorder %s13, 1
      %s118 = scalar_select %p117, %s13, 1
      %s119 = smul.addr %s118, 8
      %s120 = scalar_lea.vmem %s0, %s119
      %p121 = pneg %p34
      %p122 = pneg %p31
      %p123 = pneg %p55
      %p124 = pneg %p52
      %p125 = pneg %p81
      %p126 = pneg %p78
      %p127 = scmp.lt.s32.totalorder %s13, 1
      %s128 = scalar_select %p127, %s13, 1
      %s129 = smul.addr %s128, 8
      %s130 = scalar_lea.vmem %s2, %s129
      %p131 = scmp.lt.s32.totalorder %s13, 1
      %s132 = scalar_select %p131, %s13, 1
      %s133 = smul.addr %s132, 8
      %s134 = scalar_lea.vmem %s0, %s133
      %p135 = scmp.lt.s32.totalorder %s13, 1
      %s136 = scalar_select %p135, %s13, 1
      %s137 = smul.addr %s136, 8
      %s138 = scalar_lea.vmem %s2, %s137
      %v139 = vld [vmem:[%s134] sm:$0xff]
      %v140 = vld [vmem:[%s1] sm:$0xff]
      %142 = vset.pattern.permute.xlu0 8
      %143 = vperm.xlu0 %142, %v140
      %v144 = vpop.permute.xlu0 %143
      %v146 = vmul.f32 %v139, %v144
      %147 = vset.pattern.permute.xlu0 9
      %148 = vperm.xlu0 %147, %v140
      %v149 = vpop.permute.xlu0 %148
      %v151 = vadd.f32 %v146, %v149
      %v152 = vmul.f32 %v151, 0.70710677
      %v153 = vand.u32 2147483647, %v152
      %v154 = vmul.f32 %v153, 0.3275911
      %v155 = vadd.f32 %v154, 1.0
      %v156 = vrcp.pop %v155
      %v157 = vmul.f32 1.0, %v156
      %v158 = vmul.f32 %v157, 1.0614054
      %v159 = vadd.f32 %v158, -1.4531521
      %v160 = vmul.f32 %v157, %v159
      %v161 = vadd.f32 %v160, 1.4214138
      %v162 = vmul.f32 %v157, %v161
      %v163 = vadd.f32 %v162, -0.28449672
      %v164 = vmul.f32 %v157, %v163
      %v165 = vadd.f32 %v164, 0.2548296
      %v166 = vmul.f32 %v157, %v165
      %v167 = vsub.f32 0.0, %v153
      %v168 = vmul.f32 %v167, %v153
      %v169 = vmul.f32 %v168, 1.442695
      %v170 = vpow.pop %v169
      %v171 = vmul.f32 %v166, %v170
      %v172 = vsub.f32 1.0, %v171
      %vm173 = vcmp.lt.f32.partialorder %v152, 0.0
      %v174 = vsub.f32 0.0, %v172
      %v175 = vsel %vm173, %v174, %v172
      %v176 = vmul.f32 %v151, 0.5
      %v177 = vadd.f32 %v175, 1.0
      %v178 = vmul.f32 %v176, %v177
      %179 = vset.pattern.permute.xlu0 10
      %180 = vperm.xlu0 %179, %v140
      %v181 = vpop.permute.xlu0 %180
      %vm183 = vcmask 64512
      %v184 = vsel %vm183, %v140, 0
      %186 = vmatprep.subr.mxu0 0.0
      %187 = vmatpush1.msra.mxu0 %v178
      %188 = vmatprep.subr.mxu0 0.0
      %189 = vmatpush1.msra.mxu0 0.0
      %190 = vmatprep.subr.mxu0 0.0
      %191 = vmatpush1.msra.mxu0 0.0
      %192 = vmatprep.subr.mxu0 0.0
      %193 = vmatpush1.msra.mxu0 0.0
      %194 = vmatprep.subr.mxu0 0.0
      %195 = vmatpush1.msra.mxu0 0.0
      %196 = vmatprep.subr.mxu0 0.0
      %197 = vmatpush1.msra.mxu0 0.0
      %198 = vmatprep.subr.mxu0 0.0
      %199 = vmatpush1.msra.mxu0 0.0
      %200 = vmatprep.subr.mxu0 0.0
      %201 = vmatpush1.msra.mxu0 0.0
      %202 = vmatprep.subr.mxu0 0.0
      %203 = vmatpush1.msra.mxu0 0.0
      %204 = vmatprep.subr.mxu0 0.0
      %205 = vmatpush1.msra.mxu0 0.0
      %206 = vmatprep.subr.mxu0 0.0
      %207 = vmatpush1.msra.mxu0 0.0
      %208 = vmatprep.subr.mxu0 0.0
      %209 = vmatpush1.msra.mxu0 0.0
      %210 = vmatprep.subr.mxu0 0.0
      %211 = vmatpush1.msra.mxu0 0.0
      %212 = vmatprep.subr.mxu0 0.0
      %213 = vmatpush1.msra.mxu0 0.0
      %214 = vmatprep.subr.mxu0 0.0
      %215 = vmatpush1.msra.mxu0 0.0
      %216 = vmatprep.subr.mxu0 0.0
      %217 = vmatpush1.msra.mxu0 0.0
      %218 = vmatprep.subr.mxu0 0.0
      %219 = vmatpush1.msra.mxu0 0.0
      %220 = vmatprep.subr.mxu0 0.0
      %221 = vmatpush1.msra.mxu0 0.0
      %222 = vmatprep.subr.mxu0 0.0
      %223 = vmatpush1.msra.mxu0 0.0
      %224 = vmatprep.subr.mxu0 0.0
      %225 = vmatpush1.msra.mxu0 0.0
      %226 = vmatprep.subr.mxu0 0.0
      %227 = vmatpush1.msra.mxu0 0.0
      %228 = vmatprep.subr.mxu0 0.0
      %229 = vmatpush1.msra.mxu0 0.0
      %230 = vmatprep.subr.mxu0 0.0
      %231 = vmatpush1.msra.mxu0 0.0
      %232 = vmatprep.subr.mxu0 0.0
      %233 = vmatpush1.msra.mxu0 0.0
      %234 = vmatprep.subr.mxu0 0.0
      %235 = vmatpush1.msra.mxu0 0.0
      %236 = vmatprep.subr.mxu0 0.0
      %237 = vmatpush1.msra.mxu0 0.0
      %238 = vmatprep.subr.mxu0 0.0
      %239 = vmatpush1.msra.mxu0 0.0
      %240 = vmatprep.subr.mxu0 0.0
      %241 = vmatpush1.msra.mxu0 0.0
      %242 = vmatprep.subr.mxu0 0.0
      %243 = vmatpush1.msra.mxu0 0.0
      %244 = vmatprep.subr.mxu0 0.0
      %245 = vmatpush1.msra.mxu0 0.0
      %246 = vmatprep.subr.mxu0 0.0
      %247 = vmatpush1.msra.mxu0 0.0
      %248 = vmatprep.subr.mxu0 0.0
      %249 = vmatpush1.msra.mxu0 0.0
      %250 = vmatprep.mubr.f32.mxu0 0.0
      %251 = vmatmul.mubr.f32.gmra.mrb[0].mxu0 %v184
      %v252 = vpop.f32.mrb[0].mxu0
      %v253 = vadd.f32 %v181, %v252
      %v254 = vpop.f32.mrb[0].mxu0
      %255 = vdwg.mxu0
      %v256 = vadd.f32 %v139, %v253
      %257 = vst [vmem:[%s138] sm:$0xff] %v256
      %p258 = scmp.lt.s32.totalorder %s13, 1
      %s259 = scalar_select %p258, %s13, 1
      %s260 = smul.addr %s259, 8
      %s261 = scalar_lea.vmem %s2, %s260
      // Predicated region
      $region29: #{mbconv_residual_forward.1} parent=27 // pred_check
        %p262 = pneg %p78
      $region30: #{mbconv_residual_forward.1} parent=27 // pred_check_branch
        %264 = sbr.rel (%p262) target = $region32
      $region31: #{mbconv_residual_forward.1} parent=27 // pred_region
        _
      $region32: #{mbconv_residual_forward.1} parent=27 // pred_fallthru
        _
    $region28: #{mbconv_residual_forward.1} parent=5 // pred_fallthru
      _
    %p265 = scmp.le.s32.totalorder 2, %s8
    // Predicated region
    $region33: #{mbconv_residual_forward.1} parent=5 // pred_check
      %p266 = pneg %p265
    $region34: #{mbconv_residual_forward.1} parent=5 // pred_check_branch
      %268 = sbr.rel (%p266) target = $region36
    $region35: #{mbconv_residual_forward.1} parent=5 // pred_region
      %s269 = ssub.s32 %s8, 2
      // Predicated region
      $region37: #{mbconv_residual_forward.1} parent=35 // pred_check
        %p270 = pneg %p84
      $region38: #{mbconv_residual_forward.1} parent=35 // pred_check_branch
        %272 = sbr.rel (%p270) target = $region40
      $region39: #{mbconv_residual_forward.1} parent=35 // pred_region
        %p273 = scmp.lt.s32.totalorder %s14, 1
        %s274 = scalar_select %p273, %s14, 1
        %s275 = smul.addr %s274, 8
        %s276 = scalar_lea.vmem %s2, %s275
      $region40: #{mbconv_residual_forward.1} parent=35 // pred_fallthru
        _
    $region36: #{mbconv_residual_forward.1} parent=5 // pred_fallthru
      _
  $region6: #{mbconv_residual_forward.1} parent=0 // loop_footer
    %s12 = sadd.s32 1, %s8
  $region7: #{mbconv_residual_forward.1} parent=0 // loop_footer_branch
    %7 = sbr.rel target = $region3
  $region8: #{mbconv_residual_forward.1} parent=0 // loop_exit
    _

</llo_original>
